<compile_context>
chip_gen: v5e
topology: v5e:2x2
jax: 0.10.0
libtpu: 0.0.40
codegen_flags: <defaults>
</compile_context>

<pallas_src>
import functools
import math

import numpy as np
import jax
import jax.numpy as jnp
from jax.experimental import pallas as pl
from jax.experimental.pallas import tpu as pltpu


# -----------------------------------------------------------------------------
# BHW packing / unpacking (glue: pure data rearrangement, plain JAX)
# -----------------------------------------------------------------------------
def convert_bhw_format(x):
    """Equivalent of Convert_BHW_Format: tile channels into a square mosaic."""
    b, c, h, w = x.shape
    buf = math.ceil(math.sqrt(c))
    side = buf if buf % 2 == 0 else buf + 1          # sqrt(nearestSqr)
    nearest_sqr = side * side
    pad_c = nearest_sqr - c
    xp = jnp.pad(x, ((0, 0), (0, pad_c), (0, 0), (0, 0)))
    # (b, side, side, h, w) -> (b, side, h, side, w) -> (b, side*h, side*w)
    data = (xp.reshape(b, side, side, h, w)
              .transpose(0, 1, 3, 2, 4)
              .reshape(b, side * h, side * w))
    return data, b, side * h, side * w, side


def inverse_bhw_format(comp_data, b, h, w, init_c, init_h, init_w, img_per_row):
    """Equivalent of Inverse_BHW_Format."""
    side = int(img_per_row)
    x = (comp_data.reshape(b, side, init_h, side, init_w)
                  .transpose(0, 1, 3, 2, 4)
                  .reshape(b, side * side, init_h, init_w))
    return x[:, :init_c]


# -----------------------------------------------------------------------------
# Pallas kernel: rmse_I .. rmse_IV  (element-wise maps + mean reductions)
# -----------------------------------------------------------------------------
_LANES = 128
_MAX_TILE_ROWS = 1024   # 1024 x 128 f32 = 512 KiB per input tile (x2 inputs x2 bufs = 2 MiB)
_NCORES = 2             # leading "parallel" grid axis (megacore split on v7x)


def _metrics_kernel(x_ref, c_ref, out_ref, acc_ref, *, n_real, tile_rows):
    i = pl.program_id(0)          # core-parallel axis
    j = pl.program_id(1)          # sequential reduction axis
    nj = pl.num_programs(1)

    @pl.when(j == 0)
    def _():
        acc_ref[...] = jnp.zeros_like(acc_ref)

    x = x_ref[...].astype(jnp.float32)
    c = c_ref[...].astype(jnp.float32)

    # Validity mask for the zero-padded flat tail (only the last real tile has
    # any padding; the mask is a handful of cheap VPU ops, so compute it always).
    chunk = tile_rows * _LANES
    base = (i * nj + j) * chunk
    row_ids = jax.lax.broadcasted_iota(jnp.int32, (tile_rows, _LANES), 0)
    lane_ids = jax.lax.broadcasted_iota(jnp.int32, (tile_rows, _LANES), 1)
    valid = (row_ids * _LANES + lane_ids) < (n_real - base)

    eps = jnp.float32(1e-6)
    delta = c - x
    diff = jnp.abs(delta)
    # rmse_I == rmse_II in the reference: compute/accumulate once, duplicate later.
    t1 = diff * pl.reciprocal(jnp.abs(x + 1.0), approx=True)
    t3 = jnp.abs(delta - eps) * pl.reciprocal(jnp.abs(x + eps), approx=True)
    t4 = (2.0 * diff) * pl.reciprocal(jnp.abs(x) + jnp.abs(c), approx=True)

    zero = jnp.float32(0.0)
    shp = (tile_rows // 8, 8, _LANES)
    # Reduce the big tile down to an (8, 128) partial before touching the
    # fixed-size accumulator (keeps VMEM flat as tiles grow).
    acc_ref[0, :, :] += jnp.where(valid, t1, zero).reshape(shp).sum(axis=0)
    acc_ref[1, :, :] += jnp.where(valid, t3, zero).reshape(shp).sum(axis=0)
    acc_ref[2, :, :] += jnp.where(valid, t4, zero).reshape(shp).sum(axis=0)

    @pl.when(j == nj - 1)
    def _():
        out_ref[0] = acc_ref[...]


def compression_metrics(comp_x, x):
    """Returns [rmse_I, rmse_II, rmse_III, rmse_IV] computed with a Pallas kernel."""
    assert comp_x.shape == x.shape
    n_real = int(np.prod(x.shape))

    rows_needed = -(-n_real // _LANES)
    rows_per_core = -(-rows_needed // _NCORES)
    tile_rows = min(_MAX_TILE_ROWS, ((rows_per_core + 7) // 8) * 8)
    steps = -(-rows_per_core // tile_rows)
    total_rows = _NCORES * steps * tile_rows

    def prep(a):
        flat = a.reshape(-1)
        pad = total_rows * _LANES - n_real
        if pad > 0:
            flat = jnp.pad(flat, (0, pad))
        return flat.reshape(total_rows, _LANES)

    x2d = prep(x)
    c2d = prep(comp_x)

    kernel = functools.partial(_metrics_kernel, n_real=n_real, tile_rows=tile_rows)
    in_spec = pl.BlockSpec((tile_rows, _LANES), lambda i, j: (i * steps + j, 0))

    partials = pl.pallas_call(
        kernel,
        out_shape=jax.ShapeDtypeStruct((_NCORES, 3, 8, _LANES), jnp.float32),
        grid_spec=pltpu.PrefetchScalarGridSpec(
            num_scalar_prefetch=0,
            grid=(_NCORES, steps),
            in_specs=[in_spec, in_spec],
            out_specs=pl.BlockSpec((1, 3, 8, _LANES), lambda i, j: (i, 0, 0, 0)),
            scratch_shapes=[pltpu.VMEM((3, 8, _LANES), jnp.float32)],
        ),
        compiler_params=pltpu.CompilerParams(
            dimension_semantics=("parallel", "arbitrary")),
    )(x2d, c2d)

    # Tiny finishing reduction (NCORES*3*8*128 elements) in the wrapper.
    sums = partials.sum(axis=(0, 2, 3)) * jnp.float32(1.0 / n_real)
    return jnp.stack([sums[0], sums[0], sums[1], sums[2]])


# -----------------------------------------------------------------------------
# Module equivalent
# -----------------------------------------------------------------------------
class CompressionLayer:
    def __init__(self, fileName, returnCompressedTensor=False, compress=False,
                 preset_value="ultrafast", crf_value="0"):
        self.fileName = fileName
        self.returnCompressedTensor = returnCompressedTensor
        self.compress = compress
        self.preset_value = preset_value
        self.crf_value = crf_value
        self.training = False
        self.last_metrics = None

    def __call__(self, x):
        comp_x = None
        if not self.training:
            if self.compress:
                init_b, init_c, init_h, init_w = x.shape
                data, b, h, w, img_per_row = convert_bhw_format(x)
                # TODO(synk): external H.264 codec (wrap.compress) has no Pallas
                # equivalent; the round trip is the identity here.
                comp_data = data
                comp_x = inverse_bhw_format(
                    comp_data, b, h, w, init_c, init_h, init_w, img_per_row
                )
                # Hot path: the four relative-error means, in the Pallas kernel.
                self.last_metrics = compression_metrics(comp_x, x)
                # TODO(synk): file-size / elapsed-time / csv logging, corrcoef
                # diagnostics and time.sleep are host-side I/O with no kernel
                # equivalent and are omitted.
            if self.returnCompressedTensor:
                return comp_x
            return x
        return x


# -----------------------------------------------------------------------------
if __name__ == "__main__":
    key = jax.random.PRNGKey(0)
    x = jax.random.normal(key, (2, 4, 16, 16), dtype=jnp.float32)

    layer = CompressionLayer("metrics_log", returnCompressedTensor=True, compress=True)
    layer.training = False

    comp_x = jax.block_until_ready(layer(x))
    metrics = np.asarray(jax.block_until_ready(layer.last_metrics))

    # Reference check (plain JAX, exact divisions) -- approx reciprocal in the
    # kernel means a slightly loose tolerance.
    eps = 1e-6
    r1 = jnp.mean(jnp.abs(comp_x - x) / jnp.abs(x + 1.0))
    r3 = jnp.mean(jnp.abs(comp_x - x - eps) / jnp.abs(x + eps))
    r4 = jnp.mean(2.0 * jnp.abs(comp_x - x) / (jnp.abs(x) + jnp.abs(comp_x)))
    ref = np.asarray(jnp.stack([r1, r1, r3, r4]))
    assert np.allclose(metrics, ref, rtol=2e-2, atol=1e-6), (metrics, ref)

    # Round-trip BHW packing must be lossless (codec is identity here).
    assert np.allclose(np.asarray(comp_x), np.asarray(x))

    # Exercise the rmse_I / rmse_IV paths with comp != x on the kernel directly.
    noise = 0.05 * jax.random.normal(jax.random.PRNGKey(1), x.shape, dtype=jnp.float32)
    comp2 = x + noise
    m2 = np.asarray(jax.block_until_ready(compression_metrics(comp2, x)))
    r1b = jnp.mean(jnp.abs(comp2 - x) / jnp.abs(x + 1.0))
    r3b = jnp.mean(jnp.abs(comp2 - x - eps) / jnp.abs(x + eps))
    r4b = jnp.mean(2.0 * jnp.abs(comp2 - x) / (jnp.abs(x) + jnp.abs(comp2)))
    ref2 = np.asarray(jnp.stack([r1b, r1b, r3b, r4b]))
    assert np.allclose(m2, ref2, rtol=2e-2, atol=1e-6), (m2, ref2)

    print("KERNEL_OK")
</pallas_src>

<mosaic_0001>
module attributes {stable_mosaic.version = 11 : i64} {
  func.func @_metrics_kernel(%arg0: i32, %arg1: i32, %arg2: memref<8x128xf32, #tpu.memory_space<vmem>>, %arg3: memref<8x128xf32, #tpu.memory_space<vmem>>, %arg4: memref<1x3x8x128xf32, #tpu.memory_space<vmem>>, %arg5: memref<3x8x128xf32, #tpu.memory_space<vmem>>) attributes {dimension_semantics = [#tpu.dimension_semantics<parallel>, #tpu.dimension_semantics<arbitrary>], iteration_bounds = array<i64: 2, 1>, scalar_prefetch = 0 : i64, scratch_operands = 1 : i64, tpu.core_type = #tpu.core_type<tc>, window_params = [{transform_indices = @transform_0, window_bounds = array<i64: 8, 128>}, {transform_indices = @transform_1, window_bounds = array<i64: 8, 128>}, {transform_indices = @transform_2, window_bounds = array<i64: 1, 3, 8, 128>}]} {
    %c0_i32 = arith.constant 0 : i32
    %0 = arith.cmpi eq, %arg1, %c0_i32 : i32
    %1 = arith.extui %0 : i1 to i32
    %c0_i32_0 = arith.constant 0 : i32
    %2 = arith.cmpi ne, %1, %c0_i32_0 : i32
    scf.if %2 {
      %cst_31 = arith.constant 0.000000e+00 : f32
      %71 = vector.broadcast %cst_31 : f32 to vector<3x8x128xf32>
      %c0_32 = arith.constant 0 : index
      %c0_33 = arith.constant 0 : index
      %c0_34 = arith.constant 0 : index
      %72 = vector.load %arg5[%c0_32, %c0_33, %c0_34] : memref<3x8x128xf32, #tpu.memory_space<vmem>>, vector<3x8x128xf32>
      tpu.vector_store %arg5[%c0_32, %c0_33, %c0_34], %71 {strides = array<i32>} : memref<3x8x128xf32, #tpu.memory_space<vmem>>, vector<3x8x128xf32>,
    } else {
    }
    %c0 = arith.constant 0 : index
    %c0_1 = arith.constant 0 : index
    %3 = vector.load %arg2[%c0, %c0_1] : memref<8x128xf32, #tpu.memory_space<vmem>>, vector<8x128xf32>
    %c0_2 = arith.constant 0 : index
    %c0_3 = arith.constant 0 : index
    %4 = vector.load %arg3[%c0_2, %c0_3] : memref<8x128xf32, #tpu.memory_space<vmem>>, vector<8x128xf32>
    %c1_i32 = arith.constant 1 : i32
    %5 = arith.muli %arg0, %c1_i32 : i32
    %6 = arith.addi %5, %arg1 : i32
    %c1024_i32 = arith.constant 1024 : i32
    %7 = arith.muli %6, %c1024_i32 : i32
    %8 = tpu.iota {dimensions = array<i32: 0>} : vector<8x128xi32>
    %9 = tpu.iota {dimensions = array<i32: 1>} : vector<8x128xi32>
    %c128_i32 = arith.constant 128 : i32
    %10 = vector.broadcast %c128_i32 : i32 to vector<8x128xi32>
    %11 = arith.muli %8, %10 : vector<8x128xi32>
    %12 = arith.addi %11, %9 : vector<8x128xi32>
    %c2048_i32 = arith.constant 2048 : i32
    %13 = arith.subi %c2048_i32, %7 : i32
    %14 = vector.broadcast %13 : i32 to vector<8x128xi32>
    %15 = arith.cmpi slt, %12, %14 : vector<8x128xi32>
    %16 = arith.subf %4, %3 : vector<8x128xf32>
    %17 = math.absf %16 : vector<8x128xf32>
    %cst = arith.constant 1.000000e+00 : f32
    %18 = vector.broadcast %cst : f32 to vector<8x128xf32>
    %19 = arith.addf %3, %18 : vector<8x128xf32>
    %20 = math.absf %19 : vector<8x128xf32>
    %21 = tpu.reciprocal %20 {approx = true} : vector<8x128xf32> -> vector<8x128xf32>
    %22 = arith.mulf %17, %21 : vector<8x128xf32>
    %cst_4 = arith.constant 9.99999997E-7 : f32
    %23 = vector.broadcast %cst_4 : f32 to vector<8x128xf32>
    %24 = arith.subf %16, %23 : vector<8x128xf32>
    %25 = math.absf %24 : vector<8x128xf32>
    %cst_5 = arith.constant 9.99999997E-7 : f32
    %26 = vector.broadcast %cst_5 : f32 to vector<8x128xf32>
    %27 = arith.addf %3, %26 : vector<8x128xf32>
    %28 = math.absf %27 : vector<8x128xf32>
    %29 = tpu.reciprocal %28 {approx = true} : vector<8x128xf32> -> vector<8x128xf32>
    %30 = arith.mulf %25, %29 : vector<8x128xf32>
    %cst_6 = arith.constant 2.000000e+00 : f32
    %31 = vector.broadcast %cst_6 : f32 to vector<8x128xf32>
    %32 = arith.mulf %31, %17 : vector<8x128xf32>
    %33 = math.absf %3 : vector<8x128xf32>
    %34 = math.absf %4 : vector<8x128xf32>
    %35 = arith.addf %33, %34 : vector<8x128xf32>
    %36 = tpu.reciprocal %35 {approx = true} : vector<8x128xf32> -> vector<8x128xf32>
    %37 = arith.mulf %32, %36 : vector<8x128xf32>
    %c0_7 = arith.constant 0 : index
    %c0_8 = arith.constant 0 : index
    %c0_9 = arith.constant 0 : index
    %38 = vector.load %arg5[%c0_7, %c0_8, %c0_9] : memref<3x8x128xf32, #tpu.memory_space<vmem>>, vector<1x8x128xf32>
    %39 = vector.shape_cast %38 : vector<1x8x128xf32> to vector<8x128xf32>
    %cst_10 = arith.constant 0.000000e+00 : f32
    %40 = vector.broadcast %cst_10 : f32 to vector<8x128xf32>
    %41 = arith.select %15, %22, %40 : vector<8x128xi1>, vector<8x128xf32>
    %42 = vector.shape_cast %41 : vector<8x128xf32> to vector<1x8x128xf32>
    %cst_11 = arith.constant dense<0.000000e+00> : vector<8x128xf32>
    %43 = vector.multi_reduction <add>, %42, %cst_11 [0] : vector<1x8x128xf32> to vector<8x128xf32>
    %44 = arith.addf %39, %43 : vector<8x128xf32>
    %c0_12 = arith.constant 0 : index
    %c0_13 = arith.constant 0 : index
    %c0_14 = arith.constant 0 : index
    %45 = vector.load %arg5[%c0_12, %c0_13, %c0_14] : memref<3x8x128xf32, #tpu.memory_space<vmem>>, vector<1x8x128xf32>
    %46 = vector.shape_cast %45 : vector<1x8x128xf32> to vector<8x128xf32>
    %47 = vector.shape_cast %44 : vector<8x128xf32> to vector<1x8x128xf32>
    tpu.vector_store %arg5[%c0_12, %c0_13, %c0_14], %47 {strides = array<i32>} : memref<3x8x128xf32, #tpu.memory_space<vmem>>, vector<1x8x128xf32>,
    %c1 = arith.constant 1 : index
    %c0_15 = arith.constant 0 : index
    %c0_16 = arith.constant 0 : index
    %48 = vector.load %arg5[%c1, %c0_15, %c0_16] : memref<3x8x128xf32, #tpu.memory_space<vmem>>, vector<1x8x128xf32>
    %49 = vector.shape_cast %48 : vector<1x8x128xf32> to vector<8x128xf32>
    %cst_17 = arith.constant 0.000000e+00 : f32
    %50 = vector.broadcast %cst_17 : f32 to vector<8x128xf32>
    %51 = arith.select %15, %30, %50 : vector<8x128xi1>, vector<8x128xf32>
    %52 = vector.shape_cast %51 : vector<8x128xf32> to vector<1x8x128xf32>
    %cst_18 = arith.constant dense<0.000000e+00> : vector<8x128xf32>
    %53 = vector.multi_reduction <add>, %52, %cst_18 [0] : vector<1x8x128xf32> to vector<8x128xf32>
    %54 = arith.addf %49, %53 : vector<8x128xf32>
    %c1_19 = arith.constant 1 : index
    %c0_20 = arith.constant 0 : index
    %c0_21 = arith.constant 0 : index
    %55 = vector.load %arg5[%c1_19, %c0_20, %c0_21] : memref<3x8x128xf32, #tpu.memory_space<vmem>>, vector<1x8x128xf32>
    %56 = vector.shape_cast %55 : vector<1x8x128xf32> to vector<8x128xf32>
    %57 = vector.shape_cast %54 : vector<8x128xf32> to vector<1x8x128xf32>
    tpu.vector_store %arg5[%c1_19, %c0_20, %c0_21], %57 {strides = array<i32>} : memref<3x8x128xf32, #tpu.memory_space<vmem>>, vector<1x8x128xf32>,
    %c2 = arith.constant 2 : index
    %c0_22 = arith.constant 0 : index
    %c0_23 = arith.constant 0 : index
    %58 = vector.load %arg5[%c2, %c0_22, %c0_23] : memref<3x8x128xf32, #tpu.memory_space<vmem>>, vector<1x8x128xf32>
    %59 = vector.shape_cast %58 : vector<1x8x128xf32> to vector<8x128xf32>
    %cst_24 = arith.constant 0.000000e+00 : f32
    %60 = vector.broadcast %cst_24 : f32 to vector<8x128xf32>
    %61 = arith.select %15, %37, %60 : vector<8x128xi1>, vector<8x128xf32>
    %62 = vector.shape_cast %61 : vector<8x128xf32> to vector<1x8x128xf32>
    %cst_25 = arith.constant dense<0.000000e+00> : vector<8x128xf32>
    %63 = vector.multi_reduction <add>, %62, %cst_25 [0] : vector<1x8x128xf32> to vector<8x128xf32>
    %64 = arith.addf %59, %63 : vector<8x128xf32>
    %c2_26 = arith.constant 2 : index
    %c0_27 = arith.constant 0 : index
    %c0_28 = arith.constant 0 : index
    %65 = vector.load %arg5[%c2_26, %c0_27, %c0_28] : memref<3x8x128xf32, #tpu.memory_space<vmem>>, vector<1x8x128xf32>
    %66 = vector.shape_cast %65 : vector<1x8x128xf32> to vector<8x128xf32>
    %67 = vector.shape_cast %64 : vector<8x128xf32> to vector<1x8x128xf32>
    tpu.vector_store %arg5[%c2_26, %c0_27, %c0_28], %67 {strides = array<i32>} : memref<3x8x128xf32, #tpu.memory_space<vmem>>, vector<1x8x128xf32>,
    %c0_i32_29 = arith.constant 0 : i32
    %68 = arith.cmpi eq, %arg1, %c0_i32_29 : i32
    %69 = arith.extui %68 : i1 to i32
    %c0_i32_30 = arith.constant 0 : i32
    %70 = arith.cmpi ne, %69, %c0_i32_30 : i32
    scf.if %70 {
      %c0_31 = arith.constant 0 : index
      %c0_32 = arith.constant 0 : index
      %c0_33 = arith.constant 0 : index
      %71 = vector.load %arg5[%c0_31, %c0_32, %c0_33] : memref<3x8x128xf32, #tpu.memory_space<vmem>>, vector<3x8x128xf32>
      %c0_34 = arith.constant 0 : index
      %c0_35 = arith.constant 0 : index
      %c0_36 = arith.constant 0 : index
      %c0_37 = arith.constant 0 : index
      %72 = vector.load %arg4[%c0_34, %c0_35, %c0_36, %c0_37] : memref<1x3x8x128xf32, #tpu.memory_space<vmem>>, vector<1x3x8x128xf32>
      %73 = vector.shape_cast %72 : vector<1x3x8x128xf32> to vector<3x8x128xf32>
      %74 = vector.shape_cast %71 : vector<3x8x128xf32> to vector<1x3x8x128xf32>
      tpu.vector_store %arg4[%c0_34, %c0_35, %c0_36, %c0_37], %74 {strides = array<i32>} : memref<1x3x8x128xf32, #tpu.memory_space<vmem>>, vector<1x3x8x128xf32>,
    } else {
    }
    return
  }
  func.func @transform_0(%arg0: i32, %arg1: i32) -> (i32, i32) {
    %c1_i32 = arith.constant 1 : i32
    %0 = arith.muli %arg0, %c1_i32 : i32
    %1 = arith.addi %0, %arg1 : i32
    %c0_i32 = arith.constant 0 : i32
    %c0_i32_0 = arith.constant 0 : i32
    return %1, %c0_i32 : i32, i32
  }
  func.func @transform_1(%arg0: i32, %arg1: i32) -> (i32, i32) {
    %c1_i32 = arith.constant 1 : i32
    %0 = arith.muli %arg0, %c1_i32 : i32
    %1 = arith.addi %0, %arg1 : i32
    %c0_i32 = arith.constant 0 : i32
    %c0_i32_0 = arith.constant 0 : i32
    return %1, %c0_i32 : i32, i32
  }
  func.func @transform_2(%arg0: i32, %arg1: i32) -> (i32, i32, i32, i32) {
    %c0_i32 = arith.constant 0 : i32
    %c0_i32_0 = arith.constant 0 : i32
    %c0_i32_1 = arith.constant 0 : i32
    %c0_i32_2 = arith.constant 0 : i32
    return %arg0, %c0_i32, %c0_i32_0, %c0_i32_1 : i32, i32, i32, i32
  }
}

</mosaic_0001>

<llo_original>
// kernel: tpu_custom_call.1
$region0: #{tpu_custom_call.1}
  #allocation0 [shape = 'u32[]', space=smem, size = 0x4, offset = 0x4, fixed_abs, tag = 'smem constant byte address 0x4 - core index']
  #allocation1 [shape = 'u32[72,128]{1,0:T(1,128)}', space=vmem, size = 0x9000, scoped, tag = 'internal scratch']
  #allocation2 [shape = 'f32[3,8,128]{2,1,0:T(8,128)}', space=vmem, size = 0x3000, scoped, tag = 'scratch operand']
  %s0 = inlined_call_operand.hbm [shape: f32[16,128], index: 0, kind: input, shape index: {}]
  %s1 = inlined_call_operand.hbm [shape: f32[16,128], index: 1, kind: input, shape index: {}]
  %s2 = inlined_call_operand.hbm [shape: f32[2,3,8,128], index: 2, kind: output, shape index: {}]
  %s3 = sld [smem:[#allocation0]]
  $region57: #{tpu_custom_call.1} parent=0
    _
  %s5 = ssub.s32 1, %s3
  %s6 = scalar_select 0, %s5, %s3
  $region1: #{tpu_custom_call.1} parent=0
    #allocation3 [shape = 'u8[8192]{0}', space=vmem, size = 0x2000, scoped, tag = 'input window, operand 0']
    #allocation4 [shape = 's32[2]{0}', space=sflag, size = 0x8, scoped, tag = 'scoped memory for tpu_custom_call.1']
    #allocation5 [shape = 's32[2]{0}', space=sflag, size = 0x8, scoped, tag = 'scoped memory for tpu_custom_call.1']
    #allocation6 [shape = 'u8[8192]{0}', space=vmem, size = 0x2000, scoped, tag = 'input window, operand 1']
    #allocation7 [shape = 's32[2]{0}', space=sflag, size = 0x8, scoped, tag = 'scoped memory for tpu_custom_call.1']
    #allocation8 [shape = 'u8[24576]{0}', space=vmem, size = 0x6000, scoped, tag = 'output window, operand 0']
    %7 = vsyncpa [#allocation4], 0
    %s8 = scalar_lea.sflag [#allocation4], 1
    %9 = vsyncpa %s8, 0
    %10 = vsyncpa [#allocation7], 0
    %s11 = scalar_lea.sflag [#allocation7], 1
    %12 = vsyncpa %s11, 0
    %13 = vsyncpa [#allocation5], 0
    %s14 = scalar_lea.sflag [#allocation5], 1
    %15 = vsyncpa %s14, 0
    loop: start=0, step=1, limit=4
    $region2: #{tpu_custom_call.1} parent=1 // loop_pre_header
      _
    $region3: #{tpu_custom_call.1} parent=1 // loop_header
      %s17 = sphi 0, %s21
      %p18 = scmp.ge.s32.totalorder %s17, 4
      %s24 = sphi 0, %s36
      %s25 = sphi 0, %s32
      %s26 = sphi 0, %s24
      %s27 = sphi 0, %s25
      %s28 = sphi 0, %s26
      %s29 = sphi 0, %s27
      %s41 = sphi 0, %s43
      %s44 = sphi 0, %s41
      %s45 = sphi 0, %s44
      %s61 = sphi 0, %s45
      %s69 = sphi 0, %s71
      %s72 = sphi 0, %s69
      %s73 = sphi 0, %s72
      %s89 = sphi 0, %s73
      %s95 = sphi 0, %s97
      %s98 = sphi 0, %s95
      %s99 = sphi 0, %s98
      %s115 = sphi 0, %s99
    $region4: #{tpu_custom_call.1} parent=1 // loop_header_branch
      %20 = sbr.rel (%p18) target = $region8
    $region5: #{tpu_custom_call.1} parent=1 // loop_body
      %s22 = ssub.s32 %s17, 1
      %s23 = ssub.s32 %s17, 2
      %s30 = sadd.s32 1, %s25
      %p31 = scmp.ge.s32.totalorder %s30, 1
      %s32 = scalar_select %p31, 0, %s30
      %s33 = sadd.s32 1, %s24
      %s34 = scalar_select %p31, %s33, %s24
      %p35 = scmp.ge.s32.totalorder %s34, 2
      %s36 = scalar_select %p35, 0, %s34
      %s37 = sadd.s32 %s24, %s25
      %s38 = sadd.s32 %s36, %s32
      %s39 = ssub.s32 %s37, %s38
      %p40 = scmp.eq.s32.totalorder %s39, 0
      %s42 = sadd.s32 %s41, 1
      %s43 = scalar_select %p40, %s41, %s42
      %p46 = pneg %p40
      %p47 = scmp.eq.s32.totalorder %s17, 1
      %p48 = por %p46, %p47
      %p49 = scmp.ne.s32.totalorder %s41, %s44
      %p50 = scmp.eq.s32.totalorder %s17, 0
      %p51 = por %p49, %p50
      %p52 = scmp.ne.s32.totalorder %s41, %s44
      %p53 = scmp.eq.s32.totalorder %s22, 1
      %p54 = por %p52, %p53
      %p55 = scmp.ne.s32.totalorder %s44, %s45
      %p56 = scmp.eq.s32.totalorder %s22, 0
      %p57 = por %p55, %p56
      %p58 = scmp.ne.s32.totalorder %s44, %s45
      %p59 = scmp.eq.s32.totalorder %s23, 1
      %p60 = por %p58, %p59
      %p62 = scmp.ne.s32.totalorder %s45, %s61
      %p63 = scmp.eq.s32.totalorder %s23, 0
      %p64 = por %p62, %p63
      %s65 = sadd.s32 %s24, %s25
      %s66 = sadd.s32 %s36, %s32
      %s67 = ssub.s32 %s65, %s66
      %p68 = scmp.eq.s32.totalorder %s67, 0
      %s70 = sadd.s32 %s69, 1
      %s71 = scalar_select %p68, %s69, %s70
      %p74 = pneg %p68
      %p75 = scmp.eq.s32.totalorder %s17, 1
      %p76 = por %p74, %p75
      %p77 = scmp.ne.s32.totalorder %s69, %s72
      %p78 = scmp.eq.s32.totalorder %s17, 0
      %p79 = por %p77, %p78
      %p80 = scmp.ne.s32.totalorder %s69, %s72
      %p81 = scmp.eq.s32.totalorder %s22, 1
      %p82 = por %p80, %p81
      %p83 = scmp.ne.s32.totalorder %s72, %s73
      %p84 = scmp.eq.s32.totalorder %s22, 0
      %p85 = por %p83, %p84
      %p86 = scmp.ne.s32.totalorder %s72, %s73
      %p87 = scmp.eq.s32.totalorder %s23, 1
      %p88 = por %p86, %p87
      %p90 = scmp.ne.s32.totalorder %s73, %s89
      %p91 = scmp.eq.s32.totalorder %s23, 0
      %p92 = por %p90, %p91
      %s93 = ssub.s32 %s24, %s36
      %p94 = scmp.eq.s32.totalorder %s93, 0
      %s96 = sadd.s32 %s95, 1
      %s97 = scalar_select %p94, %s95, %s96
      %p100 = pneg %p94
      %p101 = scmp.eq.s32.totalorder %s17, 1
      %p102 = por %p100, %p101
      %p103 = scmp.ne.s32.totalorder %s95, %s98
      %p104 = scmp.eq.s32.totalorder %s17, 0
      %p105 = por %p103, %p104
      %p106 = scmp.ne.s32.totalorder %s95, %s98
      %p107 = scmp.eq.s32.totalorder %s22, 1
      %p108 = por %p106, %p107
      %p109 = scmp.ne.s32.totalorder %s98, %s99
      %p110 = scmp.eq.s32.totalorder %s22, 0
      %p111 = por %p109, %p110
      %p112 = scmp.ne.s32.totalorder %s98, %s99
      %p113 = scmp.eq.s32.totalorder %s23, 1
      %p114 = por %p112, %p113
      %p116 = scmp.ne.s32.totalorder %s99, %s115
      %p117 = scmp.eq.s32.totalorder %s23, 0
      %p118 = por %p116, %p117
      %p119 = scmp.le.s32.totalorder 1, %s17
      %p120 = scmp.lt.s32.totalorder %s17, 3
      %p121 = pnand %p119, %p120
      %p122 = pneg %p121
      // Predicated region
      $region9: #{tpu_custom_call.1} parent=5 // pred_check
        _
      $region10: #{tpu_custom_call.1} parent=5 // pred_check_branch
        %124 = sbr.rel (%p121) target = $region12
      $region11: #{tpu_custom_call.1} parent=5 // pred_region
        %s125 = ssub.s32 %s17, 1
      $region12: #{tpu_custom_call.1} parent=5 // pred_fallthru
        _
      %p126 = scmp.lt.s32.totalorder %s17, 2
      // Predicated region
      $region13: #{tpu_custom_call.1} parent=5 // pred_check
        %p127 = pneg %p126
      $region14: #{tpu_custom_call.1} parent=5 // pred_check_branch
        %129 = sbr.rel (%p127) target = $region16
      $region15: #{tpu_custom_call.1} parent=5 // pred_region
        // Predicated region
        $region17: #{tpu_custom_call.1} parent=15 // pred_check
          %p130 = pneg %p51
        $region18: #{tpu_custom_call.1} parent=15 // pred_check_branch
          %132 = sbr.rel (%p130) target = $region20
        $region19: #{tpu_custom_call.1} parent=15 // pred_region
          %s133 = sand.u32 %s41, 1
          %s134 = scalar_lea.sflag [#allocation4], %s133
          %s135 = sand.u32 %s41, 1
          %s136 = smul.addr %s135, 8
          %s137 = scalar_lea.vmem [#allocation3], %s136
          %s138 = sadd.s32 %s24, %s25
          %140 = vsyncadd %s134, 0
          %s141 = smul.addr %s138, 8
          %s142 = scalar_lea.hbm %s0, %s141
          %s144 = sshll.u32 %s142, 4
          %s145 = int_to_ptr.hbm [resolvable:$true] %s144
          %s146 = sshll.u32 %s137, 4
          %s147 = int_to_ptr.vmem [resolvable:$true] %s146
          %149 = dma.hbm_to_vmem [thread:$0]  %s145, 128, %s147, %s134
        $region20: #{tpu_custom_call.1} parent=15 // pred_fallthru
          _
        // Predicated region
        $region21: #{tpu_custom_call.1} parent=15 // pred_check
          %p150 = pneg %p79
        $region22: #{tpu_custom_call.1} parent=15 // pred_check_branch
          %152 = sbr.rel (%p150) target = $region24
        $region23: #{tpu_custom_call.1} parent=15 // pred_region
          %s153 = sand.u32 %s69, 1
          %s154 = scalar_lea.sflag [#allocation7], %s153
          %s155 = sand.u32 %s69, 1
          %s156 = smul.addr %s155, 8
          %s157 = scalar_lea.vmem [#allocation6], %s156
          %s158 = sadd.s32 %s24, %s25
          %160 = vsyncadd %s154, 0
          %s161 = smul.addr %s158, 8
          %s162 = scalar_lea.hbm %s1, %s161
          %s164 = sshll.u32 %s162, 4
          %s165 = int_to_ptr.hbm [resolvable:$true] %s164
          %s166 = sshll.u32 %s157, 4
          %s167 = int_to_ptr.vmem [resolvable:$true] %s166
          %169 = dma.hbm_to_vmem [thread:$0]  %s165, 128, %s167, %s154
        $region24: #{tpu_custom_call.1} parent=15 // pred_fallthru
          _
      $region16: #{tpu_custom_call.1} parent=5 // pred_fallthru
        _
      %p170 = scmp.le.s32.totalorder 1, %s17
      %p171 = scmp.lt.s32.totalorder %s17, 3
      %p172 = pnand %p170, %p171
      %p173 = pneg %p172
      // Predicated region
      $region25: #{tpu_custom_call.1} parent=5 // pred_check
        _
      $region26: #{tpu_custom_call.1} parent=5 // pred_check_branch
        %175 = sbr.rel (%p172) target = $region28
      $region27: #{tpu_custom_call.1} parent=5 // pred_region
        %s176 = ssub.s32 %s17, 1
        %s177 = sand.u32 %s44, 1
        %s178 = scalar_lea.sflag [#allocation4], %s177
        %s179 = sand.u32 %s44, 1
        %s180 = smul.addr %s179, 8
        %s181 = scalar_lea.vmem [#allocation3], %s180
        // Predicated region
        $region29: #{tpu_custom_call.1} parent=27 // pred_check
          %p182 = pneg %p57
        $region30: #{tpu_custom_call.1} parent=27 // pred_check_branch
          %184 = sbr.rel (%p182) target = $region32
        $region31: #{tpu_custom_call.1} parent=27 // pred_region
          %186 = dma.done %s178, 128
        $region32: #{tpu_custom_call.1} parent=27 // pred_fallthru
          _
        %s187 = sand.u32 %s72, 1
        %s188 = scalar_lea.sflag [#allocation7], %s187
        %s189 = sand.u32 %s72, 1
        %s190 = smul.addr %s189, 8
        %s191 = scalar_lea.vmem [#allocation6], %s190
        // Predicated region
        $region33: #{tpu_custom_call.1} parent=27 // pred_check
          %p192 = pneg %p85
        $region34: #{tpu_custom_call.1} parent=27 // pred_check_branch
          %194 = sbr.rel (%p192) target = $region36
        $region35: #{tpu_custom_call.1} parent=27 // pred_region
          %196 = dma.done %s188, 128
        $region36: #{tpu_custom_call.1} parent=27 // pred_fallthru
          _
        %s197 = sand.u32 %s44, 1
        %s198 = scalar_lea.sflag [#allocation4], %s197
        %s199 = sand.u32 %s44, 1
        %s200 = smul.addr %s199, 8
        %s201 = scalar_lea.vmem [#allocation3], %s200
        %p202 = pneg %p57
        %p203 = pneg %p54
        %s204 = sand.u32 %s72, 1
        %s205 = scalar_lea.sflag [#allocation7], %s204
        %s206 = sand.u32 %s72, 1
        %s207 = smul.addr %s206, 8
        %s208 = scalar_lea.vmem [#allocation6], %s207
        %p209 = pneg %p85
        %p210 = pneg %p82
        %p211 = pneg %p111
        %p212 = pneg %p108
        %s213 = sand.u32 %s98, 1
        %s214 = scalar_lea.sflag [#allocation5], %s213
        %s215 = sand.u32 %s98, 1
        %s216 = smul.addr %s215, 24
        %s217 = scalar_lea.vmem [#allocation8], %s216
        %s218 = sadd.s32 %s26, %s27
        %s219 = sadd.s32 %s26, %s27
        %p220 = scmp.eq.s32.totalorder %s27, 0
        // Predicated region
        $region37: #{tpu_custom_call.1} parent=27 // pred_check
          %p221 = pneg %p220
        $region38: #{tpu_custom_call.1} parent=27 // pred_check_branch
          %223 = sbr.rel (%p221) target = $region40
        $region39: #{tpu_custom_call.1} parent=27 // pred_region
          %224 = vst [vmem:[#allocation2] sm:$0xff] 0.0
          %225 = vst [vmem:[#allocation2 + $0x8] sm:$0xff] 0.0
          %226 = vst [vmem:[#allocation2 + $0x10] sm:$0xff] 0.0
        $region40: #{tpu_custom_call.1} parent=27 // pred_fallthru
          _
        %v227 = vld [vmem:[%s181] sm:$0xff]
        %v228 = vld [vmem:[%s191] sm:$0xff]
        %s229 = sadd.s32 %s26, %s27
        %s230 = smul.u32 %s229, 1024
        %v231 = vlaneseq
        %v232 = vshrl.u32 %v231, 7
        %v233 = vlaneseq
        %v234 = vand.u32 %v233, 127
        %v235 = vmul.u32 %v232, 128
        %v236 = vadd.s32 %v235, %v234
        %s237 = ssub.s32 2048, %s230
        %v238 = vstv %s237
        %vm239 = vcmp.lt.s32.totalorder %v236, %v238
        %v240 = vsub.f32 %v228, %v227
        %v241 = vand.u32 2147483647, %v240
        %v242 = vadd.f32 %v227, 1.0
        %v243 = vand.u32 2147483647, %v242
        %v244 = vrcp.pop %v243
        %v245 = vmul.f32 %v241, %v244
        %v246 = vsub.f32 %v240, 1e-06
        %v247 = vand.u32 2147483647, %v246
        %v248 = vadd.f32 %v227, 1e-06
        %v249 = vand.u32 2147483647, %v248
        %v250 = vrcp.pop %v249
        %v251 = vmul.f32 %v247, %v250
        %v252 = vmul.f32 %v241, 2.0
        %v253 = vand.u32 2147483647, %v227
        %v254 = vand.u32 2147483647, %v228
        %v255 = vadd.f32 %v253, %v254
        %v256 = vrcp.pop %v255
        %v257 = vmul.f32 %v252, %v256
        %v258 = vld [vmem:[#allocation2] sm:$0xff]
        %v259 = vsel %vm239, %v245, 0.0
        %v260 = vadd.f32 %v259, 0.0
        %v261 = vadd.f32 %v258, %v260
        %262 = vst [vmem:[#allocation2] sm:$0xff] %v261
        %s263 = scalar_lea.vmem [#allocation2], 8
        %v264 = vld [vmem:[%s263] sm:$0xff]
        %v265 = vsel %vm239, %v251, 0.0
        %v266 = vadd.f32 %v265, 0.0
        %v267 = vadd.f32 %v264, %v266
        %268 = vst [vmem:[%s263] sm:$0xff] %v267
        %s269 = scalar_lea.vmem [#allocation2], 16
        %v270 = vld [vmem:[%s269] sm:$0xff]
        %v271 = vsel %vm239, %v257, 0.0
        %v272 = vadd.f32 %v271, 0.0
        %v273 = vadd.f32 %v270, %v272
        %274 = vst [vmem:[%s269] sm:$0xff] %v273
        // Predicated region
        $region41: #{tpu_custom_call.1} parent=27 // pred_check
          %p275 = pneg %p220
        $region42: #{tpu_custom_call.1} parent=27 // pred_check_branch
          %277 = sbr.rel (%p275) target = $region44
        $region43: #{tpu_custom_call.1} parent=27 // pred_region
          %v278 = vld [vmem:[#allocation2] sm:$0xff]
          %v279 = vld [vmem:[#allocation2 + $0x8] sm:$0xff]
          %v280 = vld [vmem:[#allocation2 + $0x10] sm:$0xff]
          %281 = vst [vmem:[%s217] sm:$0xff] %v278
          %282 = vst [vmem:[%s217 + $0x8] sm:$0xff] %v279
          %283 = vst [vmem:[%s217 + $0x10] sm:$0xff] %v280
        $region44: #{tpu_custom_call.1} parent=27 // pred_fallthru
          _
        %s284 = sand.u32 %s98, 1
        %s285 = scalar_lea.sflag [#allocation5], %s284
        %s286 = sand.u32 %s98, 1
        %s287 = smul.addr %s286, 24
        %s288 = scalar_lea.vmem [#allocation8], %s287
        // Predicated region
        $region45: #{tpu_custom_call.1} parent=27 // pred_check
          %p289 = pneg %p108
        $region46: #{tpu_custom_call.1} parent=27 // pred_check_branch
          %291 = sbr.rel (%p289) target = $region48
        $region47: #{tpu_custom_call.1} parent=27 // pred_region
          %293 = vsyncadd %s285, 0
          %s294 = smul.addr %s26, 3
          %s295 = smul.addr %s294, 8
          %s296 = scalar_lea.hbm %s2, %s295
          %s297 = sshll.u32 %s288, 4
          %s298 = int_to_ptr.vmem [resolvable:$true] %s297
          %s299 = sshll.u32 %s296, 4
          %s300 = int_to_ptr.hbm [resolvable:$true] %s299
          %305 = dma.vmem_to_hbm [thread:$0]  %s298, 384, %s300, %s285, 128, 128, 8
        $region48: #{tpu_custom_call.1} parent=27 // pred_fallthru
          _
      $region28: #{tpu_custom_call.1} parent=5 // pred_fallthru
        _
      %p306 = scmp.le.s32.totalorder 2, %s17
      // Predicated region
      $region49: #{tpu_custom_call.1} parent=5 // pred_check
        %p307 = pneg %p306
      $region50: #{tpu_custom_call.1} parent=5 // pred_check_branch
        %309 = sbr.rel (%p307) target = $region52
      $region51: #{tpu_custom_call.1} parent=5 // pred_region
        %s310 = ssub.s32 %s17, 2
        // Predicated region
        $region53: #{tpu_custom_call.1} parent=51 // pred_check
          %p311 = pneg %p114
        $region54: #{tpu_custom_call.1} parent=51 // pred_check_branch
          %313 = sbr.rel (%p311) target = $region56
        $region55: #{tpu_custom_call.1} parent=51 // pred_region
          %s314 = sand.u32 %s99, 1
          %s315 = scalar_lea.sflag [#allocation5], %s314
          %s316 = sand.u32 %s99, 1
          %s317 = smul.addr %s316, 24
          %s318 = scalar_lea.vmem [#allocation8], %s317
          %320 = dma.done %s315, 384
        $region56: #{tpu_custom_call.1} parent=51 // pred_fallthru
          _
      $region52: #{tpu_custom_call.1} parent=5 // pred_fallthru
        _
    $region6: #{tpu_custom_call.1} parent=1 // loop_footer
      %s21 = sadd.s32 1, %s17
    $region7: #{tpu_custom_call.1} parent=1 // loop_footer_branch
      %16 = sbr.rel target = $region3
    $region8: #{tpu_custom_call.1} parent=1 // loop_exit
      _
    %321 = vsyncpa [#allocation4], 1
    %s322 = scalar_lea.sflag [#allocation4], 1
    %323 = vsyncpa %s322, 1
    %324 = vsyncpa [#allocation7], 1
    %s325 = scalar_lea.sflag [#allocation7], 1
    %326 = vsyncpa %s325, 1
    %327 = vsyncpa [#allocation5], 1
    %s328 = scalar_lea.sflag [#allocation5], 1
    %329 = vsyncpa %s328, 1

</llo_original>
